<compile_context>
chip_gen: v6e
topology: v6e:2x2x1
jax: 0.10.0
libtpu: 0.0.40
codegen_flags: <defaults>
</compile_context>

<pallas_src>
import functools

import numpy as np
import jax
import jax.numpy as jnp
from jax.experimental import pallas as pl
from jax.experimental.pallas import tpu as pltpu


def _gelu_tanh(x):
    # tanh-approximate GELU, computed in f32 (tanh goes to the EUP slot).
    # TODO(synk): PyTorch nn.GELU() defaults to the exact erf form; the tanh
    # approximation (|err| ~1e-3) is used because tanh has a guaranteed Mosaic
    # lowering while erf does not.
    c = 0.7978845608028654  # sqrt(2/pi)
    return 0.5 * x * (1.0 + jnp.tanh(c * (x + 0.044715 * x * x * x)))


def ffn_kernel(x_ref, w1_ref, b1_ref, w2_ref, b2_ref, o_ref, acc_ref):
    # x_ref:  (tm, Dp)  x.dtype   w1_ref: (Dp, tf) bf16   b1_ref: (1, tf) f32
    # w2_ref: (tf, Dp)  bf16      b2_ref: (1, Dp)  f32
    # o_ref:  (tm, Dp)  x.dtype   acc_ref: (tm, Dp) f32 scratch (persists over j)
    j = pl.program_id(1)

    @pl.when(j == 0)
    def _():
        acc_ref[...] = jnp.zeros_like(acc_ref)

    # First matmul: (tm, Dp) @ (Dp, tf) on the MXU, f32 accumulation.
    # x is cast to the MXU dtype in-kernel (no wrapper-side cast pass).
    xc = x_ref[...].astype(w1_ref.dtype)
    h = jnp.dot(xc, w1_ref[...], preferred_element_type=jnp.float32)
    h = _gelu_tanh(h + b1_ref[...])

    # Second matmul: partial contraction over this hidden tile, (tm, tf)@(tf, Dp).
    acc_ref[...] += jnp.dot(h.astype(w2_ref.dtype), w2_ref[...],
                            preferred_element_type=jnp.float32)

    @pl.when(j == pl.num_programs(1) - 1)
    def _():
        o_ref[...] = (acc_ref[...] + b2_ref[...]).astype(o_ref.dtype)


def _round_up(x, m):
    return (x + m - 1) // m * m


def _cdiv(a, b):
    return (a + b - 1) // b


def _tpu_generation_info():
    """Returns (target_row_tile, vmem_capacity_bytes, num_parallel_cores)."""
    try:
        kind = jax.devices()[0].device_kind.lower()
    except Exception:  # pragma: no cover - non-TPU fallback
        kind = ""
    try:
        vmem_cap = int(pltpu.get_tpu_info().vmem_capacity_bytes)
    except Exception:
        vmem_cap = None

    if "v6" in kind:                       # v6e: break-even ~680 flops/byte
        target_tm, cap_default, cores = 1024, 128 << 20, 1
    elif "v5p" in kind or "v4" in kind:    # megacore generations
        target_tm, cap_default, cores = 512, 128 << 20, 2
    elif "v5" in kind:                     # v5e / v5 lite
        target_tm, cap_default, cores = 512, 128 << 20, 1
    elif "7" in kind:                      # v7x: 64 MiB VMEM / TC, 2 TCs
        target_tm, cap_default, cores = 512, 64 << 20, 2
    else:                                  # unknown: conservative
        target_tm, cap_default, cores = 512, 64 << 20, 1
    if vmem_cap is None:
        vmem_cap = cap_default
    return target_tm, vmem_cap, cores


def _vmem_estimate(tm, tf, d_p, x_sz, c_sz, o_sz):
    # Double-buffered input/output tiles + persistent f32 accumulator.
    return (2 * tm * d_p * x_sz          # x tiles
            + 2 * d_p * tf * c_sz        # W1 tiles
            + 2 * tf * d_p * c_sz        # W2 tiles
            + 2 * 8 * tf * 4             # b1 (padded to 8 sublanes)
            + 2 * 8 * d_p * 4            # b2
            + 2 * tm * d_p * o_sz        # out tiles
            + tm * d_p * 4)              # accumulator scratch


@functools.partial(jax.jit, static_argnames=("compute_dtype",))
def feed_forward(x, w1, b1, w2, b2, *, compute_dtype=jnp.bfloat16):
    """FeedForward: GELU(x @ W1 + b1) @ W2 + b2.

    x: [B, S, D]; w1: [D, F]; b1: [F]; w2: [F, D]; b2: [D] -> [B, S, D]
    Pass W1/W2 already in `compute_dtype` (bf16) to avoid a wrapper cast pass.
    """
    B, S, D = x.shape
    F = w1.shape[1]
    rows = B * S

    target_tm, vmem_cap, n_cores = _tpu_generation_info()

    # Pad D (lane dim of the output store, K of matmul 1, N of matmul 2) to a
    # multiple of 128 for lane-dense stores and full MXU passes.
    D_p = _round_up(D, 128)
    # Hidden tile (lanes of the first matmul's output): multiple of 128.
    tf = min(512, _round_up(F, 128))

    # Row tile = arithmetic-intensity knob (W1/W2 re-streamed per row tile).
    tm = min(target_tm, _round_up(rows, 8))

    x_sz = np.dtype(x.dtype).itemsize
    c_sz = np.dtype(compute_dtype).itemsize
    o_sz = np.dtype(x.dtype).itemsize

    # Fit (tm, tf) to the generation's VMEM budget (leave ~8 MiB headroom for
    # Mosaic internal scratch); shrink tf first (keeps tm, the AI knob, large).
    budget = max(vmem_cap - (8 << 20), 8 << 20)
    while True:
        est = _vmem_estimate(tm, tf, D_p, x_sz, c_sz, o_sz)
        if est + est // 5 <= budget:
            break
        if tf > 256:
            tf //= 2
        elif tm > 64:
            tm = max(8, _round_up(tm // 2, 8))
        else:
            break
    # TODO(synk): for very large D (>= 8192) add a K-tiling of D (third grid
    # axis / inner emit_pipeline) instead of shrinking tm below break-even.

    # Megacore chips: guarantee >= 2 row tiles on the "parallel" axis so both
    # TensorCores get work.
    while n_cores >= 2 and tm > 8 and _cdiv(rows, tm) < 2:
        tm = max(8, _round_up(tm // 2, 8))

    F_p = _round_up(F, tf)
    rows_p = _round_up(rows, tm)

    est = _vmem_estimate(tm, tf, D_p, x_sz, c_sz, o_sz)
    vmem_limit = int(min(max(vmem_cap - (4 << 20), 16 << 20),
                         max(est + est // 5 + (2 << 20), 16 << 20)))

    # Activations: no wrapper-side cast (cast happens in-kernel); pad only if
    # needed.  Padded x columns are zero -> zero contribution in matmul 1.
    x2 = x.reshape(rows, D)
    if rows_p != rows or D_p != D:
        x2 = jnp.pad(x2, ((0, rows_p - rows), (0, D_p - D)))

    # Weights: cast only when not already in compute dtype.
    w1c = w1 if w1.dtype == compute_dtype else w1.astype(compute_dtype)
    w2c = w2 if w2.dtype == compute_dtype else w2.astype(compute_dtype)
    b1f = b1.astype(jnp.float32)
    b2f = b2.astype(jnp.float32)
    if F_p != F or D_p != D:
        # Padded W1 columns give GELU(0 + 0) = 0 -> zero contribution to the
        # second matmul; padded W2 / b2 columns are sliced off below.
        w1c = jnp.pad(w1c, ((0, D_p - D), (0, F_p - F)))
        b1f = jnp.pad(b1f, ((0, F_p - F),))
        w2c = jnp.pad(w2c, ((0, F_p - F), (0, D_p - D)))
        b2f = jnp.pad(b2f, ((0, D_p - D),))
    b1f = b1f.reshape(1, F_p)
    b2f = b2f.reshape(1, D_p)

    grid = (rows_p // tm, F_p // tf)

    out = pl.pallas_call(
        ffn_kernel,
        out_shape=jax.ShapeDtypeStruct((rows_p, D_p), x.dtype),
        grid_spec=pltpu.PrefetchScalarGridSpec(
            num_scalar_prefetch=0,
            grid=grid,
            in_specs=[
                pl.BlockSpec((tm, D_p), lambda i, j: (i, 0)),   # x rows (resident over j)
                pl.BlockSpec((D_p, tf), lambda i, j: (0, j)),   # W1 hidden tile
                pl.BlockSpec((1, tf), lambda i, j: (0, j)),     # b1 hidden tile
                pl.BlockSpec((tf, D_p), lambda i, j: (j, 0)),   # W2 hidden tile
                pl.BlockSpec((1, D_p), lambda i, j: (0, 0)),    # b2
            ],
            out_specs=pl.BlockSpec((tm, D_p), lambda i, j: (i, 0)),
            scratch_shapes=[pltpu.VMEM((tm, D_p), jnp.float32)],
        ),
        compiler_params=pltpu.CompilerParams(
            dimension_semantics=("parallel", "arbitrary"),
            vmem_limit_bytes=vmem_limit),
    )(x2, w1c, b1f, w2c, b2f)

    return out[:rows, :D].reshape(B, S, D)


def reference(x, w1, b1, w2, b2, compute_dtype=jnp.bfloat16):
    # Same bf16-operand / f32-accumulation / tanh-GELU recipe as the kernel.
    xc = x.astype(compute_dtype)
    h = jnp.dot(xc, w1.astype(compute_dtype),
                preferred_element_type=jnp.float32) + b1.astype(jnp.float32)
    h = _gelu_tanh(h)
    out = jnp.dot(h.astype(compute_dtype), w2.astype(compute_dtype),
                  preferred_element_type=jnp.float32) + b2.astype(jnp.float32)
    return out.astype(x.dtype)


if __name__ == "__main__":
    key = jax.random.PRNGKey(0)
    B, S, dim, ff_dim = 2, 8, 32, 128
    kx, kw1, kb1, kw2, kb2 = jax.random.split(key, 5)

    x = jax.random.normal(kx, (B, S, dim), dtype=jnp.float32)
    w1 = jax.random.normal(kw1, (dim, ff_dim), dtype=jnp.float32) / jnp.sqrt(dim)
    b1 = 0.1 * jax.random.normal(kb1, (ff_dim,), dtype=jnp.float32)
    w2 = jax.random.normal(kw2, (ff_dim, dim), dtype=jnp.float32) / jnp.sqrt(ff_dim)
    b2 = 0.1 * jax.random.normal(kb2, (dim,), dtype=jnp.float32)

    out = feed_forward(x, w1, b1, w2, b2)
    out = jax.block_until_ready(out)

    ref = reference(x, w1, b1, w2, b2)
    assert out.shape == (B, S, dim)
    max_err = float(jnp.max(jnp.abs(out - ref)))
    assert jnp.allclose(out, ref, atol=2e-2, rtol=2e-2), max_err

    print("KERNEL_OK")
</pallas_src>

<mosaic_0001>
module attributes {stable_mosaic.version = 11 : i64} {
  func.func @ffn_kernel(%arg0: i32, %arg1: i32, %arg2: memref<16x128xf32, #tpu.memory_space<vmem>>, %arg3: memref<128x128xbf16, #tpu.memory_space<vmem>>, %arg4: memref<1x128xf32, #tpu.memory_space<vmem>>, %arg5: memref<128x128xbf16, #tpu.memory_space<vmem>>, %arg6: memref<1x128xf32, #tpu.memory_space<vmem>>, %arg7: memref<16x128xf32, #tpu.memory_space<vmem>>, %arg8: memref<16x128xf32, #tpu.memory_space<vmem>>) attributes {dimension_semantics = [#tpu.dimension_semantics<parallel>, #tpu.dimension_semantics<arbitrary>], iteration_bounds = array<i64: 1, 1>, scalar_prefetch = 0 : i64, scratch_operands = 1 : i64, tpu.core_type = #tpu.core_type<tc>, window_params = [{transform_indices = @transform_0, window_bounds = array<i64: 16, 128>}, {transform_indices = @transform_1, window_bounds = array<i64: 128, 128>}, {transform_indices = @transform_2, window_bounds = array<i64: 1, 128>}, {transform_indices = @transform_3, window_bounds = array<i64: 128, 128>}, {pipeline_mode = #tpu.pipeline_mode<synchronous>, transform_indices = @transform_4, window_bounds = array<i64: 1, 128>}, {transform_indices = @transform_5, window_bounds = array<i64: 16, 128>}]} {
    %c0_i32 = arith.constant 0 : i32
    %0 = arith.cmpi eq, %arg1, %c0_i32 : i32
    %1 = arith.extui %0 : i1 to i32
    %c0_i32_0 = arith.constant 0 : i32
    %2 = arith.cmpi ne, %1, %c0_i32_0 : i32
    scf.if %2 {
      %cst_19 = arith.constant 0.000000e+00 : f32
      %32 = vector.broadcast %cst_19 : f32 to vector<16x128xf32>
      %c0_20 = arith.constant 0 : index
      %c0_21 = arith.constant 0 : index
      %33 = vector.load %arg8[%c0_20, %c0_21] : memref<16x128xf32, #tpu.memory_space<vmem>>, vector<16x128xf32>
      tpu.vector_store %arg8[%c0_20, %c0_21], %32 {strides = array<i32>} : memref<16x128xf32, #tpu.memory_space<vmem>>, vector<16x128xf32>,
    } else {
    }
    %c0 = arith.constant 0 : index
    %c0_1 = arith.constant 0 : index
    %3 = vector.load %arg2[%c0, %c0_1] : memref<16x128xf32, #tpu.memory_space<vmem>>, vector<16x128xf32>
    %4 = arith.truncf %3 : vector<16x128xf32> to vector<16x128xbf16>
    %c0_2 = arith.constant 0 : index
    %c0_3 = arith.constant 0 : index
    %5 = vector.load %arg3[%c0_2, %c0_3] : memref<128x128xbf16, #tpu.memory_space<vmem>>, vector<128x128xbf16>
    %cst = arith.constant dense<0.000000e+00> : vector<16x128xf32>
    %6 = tpu.matmul %4, %5, %cst {dimension_numbers = #tpu.dot_dimension_numbers<[1], [0], [0], [1], [0, 0, 1, 1], [], []>} : vector<16x128xbf16>, vector<128x128xbf16>, vector<16x128xf32> -> vector<16x128xf32>
    %c0_4 = arith.constant 0 : index
    %c0_5 = arith.constant 0 : index
    %7 = vector.load %arg4[%c0_4, %c0_5] : memref<1x128xf32, #tpu.memory_space<vmem>>, vector<1x128xf32>
    %8 = vector.broadcast %7 : vector<1x128xf32> to vector<16x128xf32>
    %9 = arith.addf %6, %8 : vector<16x128xf32>
    %cst_6 = arith.constant 5.000000e-01 : f32
    %10 = vector.broadcast %cst_6 : f32 to vector<16x128xf32>
    %11 = arith.mulf %10, %9 : vector<16x128xf32>
    %cst_7 = arith.constant 4.471500e-02 : f32
    %12 = vector.broadcast %cst_7 : f32 to vector<16x128xf32>
    %13 = arith.mulf %12, %9 : vector<16x128xf32>
    %14 = arith.mulf %13, %9 : vector<16x128xf32>
    %15 = arith.mulf %14, %9 : vector<16x128xf32>
    %16 = arith.addf %9, %15 : vector<16x128xf32>
    %cst_8 = arith.constant 0.797884583 : f32
    %17 = vector.broadcast %cst_8 : f32 to vector<16x128xf32>
    %18 = arith.mulf %17, %16 : vector<16x128xf32>
    %19 = math.tanh %18 : vector<16x128xf32>
    %cst_9 = arith.constant 1.000000e+00 : f32
    %20 = vector.broadcast %cst_9 : f32 to vector<16x128xf32>
    %21 = arith.addf %20, %19 : vector<16x128xf32>
    %22 = arith.mulf %11, %21 : vector<16x128xf32>
    %c0_10 = arith.constant 0 : index
    %c0_11 = arith.constant 0 : index
    %23 = vector.load %arg8[%c0_10, %c0_11] : memref<16x128xf32, #tpu.memory_space<vmem>>, vector<16x128xf32>
    %24 = arith.truncf %22 : vector<16x128xf32> to vector<16x128xbf16>
    %c0_12 = arith.constant 0 : index
    %c0_13 = arith.constant 0 : index
    %25 = vector.load %arg5[%c0_12, %c0_13] : memref<128x128xbf16, #tpu.memory_space<vmem>>, vector<128x128xbf16>
    %cst_14 = arith.constant dense<0.000000e+00> : vector<16x128xf32>
    %26 = tpu.matmul %24, %25, %cst_14 {dimension_numbers = #tpu.dot_dimension_numbers<[1], [0], [0], [1], [0, 0, 1, 1], [], []>} : vector<16x128xbf16>, vector<128x128xbf16>, vector<16x128xf32> -> vector<16x128xf32>
    %27 = arith.addf %23, %26 : vector<16x128xf32>
    %c0_15 = arith.constant 0 : index
    %c0_16 = arith.constant 0 : index
    %28 = vector.load %arg8[%c0_15, %c0_16] : memref<16x128xf32, #tpu.memory_space<vmem>>, vector<16x128xf32>
    tpu.vector_store %arg8[%c0_15, %c0_16], %27 {strides = array<i32>} : memref<16x128xf32, #tpu.memory_space<vmem>>, vector<16x128xf32>,
    %c0_i32_17 = arith.constant 0 : i32
    %29 = arith.cmpi eq, %arg1, %c0_i32_17 : i32
    %30 = arith.extui %29 : i1 to i32
    %c0_i32_18 = arith.constant 0 : i32
    %31 = arith.cmpi ne, %30, %c0_i32_18 : i32
    scf.if %31 {
      %c0_19 = arith.constant 0 : index
      %c0_20 = arith.constant 0 : index
      %32 = vector.load %arg8[%c0_19, %c0_20] : memref<16x128xf32, #tpu.memory_space<vmem>>, vector<16x128xf32>
      %c0_21 = arith.constant 0 : index
      %c0_22 = arith.constant 0 : index
      %33 = vector.load %arg6[%c0_21, %c0_22] : memref<1x128xf32, #tpu.memory_space<vmem>>, vector<1x128xf32>
      %34 = vector.broadcast %33 : vector<1x128xf32> to vector<16x128xf32>
      %35 = arith.addf %32, %34 : vector<16x128xf32>
      %c0_23 = arith.constant 0 : index
      %c0_24 = arith.constant 0 : index
      %36 = vector.load %arg7[%c0_23, %c0_24] : memref<16x128xf32, #tpu.memory_space<vmem>>, vector<16x128xf32>
      tpu.vector_store %arg7[%c0_23, %c0_24], %35 {strides = array<i32>} : memref<16x128xf32, #tpu.memory_space<vmem>>, vector<16x128xf32>,
    } else {
    }
    return
  }
  func.func @transform_0(%arg0: i32, %arg1: i32) -> (i32, i32) {
    %c0_i32 = arith.constant 0 : i32
    %c0_i32_0 = arith.constant 0 : i32
    return %arg0, %c0_i32 : i32, i32
  }
  func.func @transform_1(%arg0: i32, %arg1: i32) -> (i32, i32) {
    %c0_i32 = arith.constant 0 : i32
    %c0_i32_0 = arith.constant 0 : i32
    return %c0_i32, %arg1 : i32, i32
  }
  func.func @transform_2(%arg0: i32, %arg1: i32) -> (i32, i32) {
    %c0_i32 = arith.constant 0 : i32
    %c0_i32_0 = arith.constant 0 : i32
    return %c0_i32, %arg1 : i32, i32
  }
  func.func @transform_3(%arg0: i32, %arg1: i32) -> (i32, i32) {
    %c0_i32 = arith.constant 0 : i32
    %c0_i32_0 = arith.constant 0 : i32
    return %arg1, %c0_i32 : i32, i32
  }
  func.func @transform_4(%arg0: i32, %arg1: i32) -> (i32, i32) {
    %c0_i32 = arith.constant 0 : i32
    %c0_i32_0 = arith.constant 0 : i32
    %c0_i32_1 = arith.constant 0 : i32
    return %c0_i32, %c0_i32_0 : i32, i32
  }
  func.func @transform_5(%arg0: i32, %arg1: i32) -> (i32, i32) {
    %c0_i32 = arith.constant 0 : i32
    %c0_i32_0 = arith.constant 0 : i32
    return %arg0, %c0_i32 : i32, i32
  }
}

</mosaic_0001>

<llo_original>
// kernel: feed_forward.1
$region0: #{feed_forward.1}
  #allocation0 [shape = 'u32[]', space=smem, size = 0x4, offset = 0x4, fixed_abs, tag = 'smem constant byte address 0x4 - core index']
  #allocation1 [shape = 'u32[144,128]{1,0:T(1,128)}', space=vmem, size = 0x12000, scoped, tag = 'internal scratch']
  #allocation2 [shape = 'f32[16,128]{1,0:T(8,128)}', space=vmem, size = 0x2000, scoped, tag = 'scratch operand']
  %s0 = inlined_call_operand.vmem [shape: f32[16,128], index: 0, kind: input, shape index: {}]
  %s1 = inlined_call_operand.vmem [shape: bf16[128,128], index: 1, kind: input, shape index: {}]
  %s2 = inlined_call_operand.vmem [shape: f32[1,128], index: 2, kind: input, shape index: {}]
  %s3 = inlined_call_operand.vmem [shape: bf16[128,128], index: 3, kind: input, shape index: {}]
  %s4 = inlined_call_operand.vmem [shape: f32[1,128], index: 4, kind: input, shape index: {}]
  %s5 = inlined_call_operand.vmem [shape: f32[16,128], index: 5, kind: output, shape index: {}]
  %s6 = sld [smem:[#allocation0]]
  $region38: #{feed_forward.1} parent=0
    _
  %s8 = ssub.s32 1, %s6
  %s9 = scalar_select 0, %s8, %s6
  // Predicated region
  $region2: #{feed_forward.1} parent=0 // pred_check
    _
  $region3: #{feed_forward.1} parent=0 // pred_check_branch
    %11 = sbr.rel (0) target = $region5
  $region4: #{feed_forward.1} parent=0 // pred_region
    _
  $region5: #{feed_forward.1} parent=0 // pred_fallthru
    _
  // Predicated region
  $region6: #{feed_forward.1} parent=0 // pred_check
    _
  $region7: #{feed_forward.1} parent=0 // pred_check_branch
    %13 = sbr.rel (0) target = $region9
  $region8: #{feed_forward.1} parent=0 // pred_region
    _
  $region9: #{feed_forward.1} parent=0 // pred_fallthru
    _
  // Predicated region
  $region10: #{feed_forward.1} parent=0 // pred_check
    _
  $region11: #{feed_forward.1} parent=0 // pred_check_branch
    %15 = sbr.rel (0) target = $region13
  $region12: #{feed_forward.1} parent=0 // pred_region
    _
  $region13: #{feed_forward.1} parent=0 // pred_fallthru
    _
  // Predicated region
  $region14: #{feed_forward.1} parent=0 // pred_check
    _
  $region15: #{feed_forward.1} parent=0 // pred_check_branch
    %17 = sbr.rel (0) target = $region17
  $region16: #{feed_forward.1} parent=0 // pred_region
    _
  $region17: #{feed_forward.1} parent=0 // pred_fallthru
    _
  // Predicated region
  $region18: #{feed_forward.1} parent=0 // pred_check
    _
  $region19: #{feed_forward.1} parent=0 // pred_check_branch
    %19 = sbr.rel (0) target = $region21
  $region20: #{feed_forward.1} parent=0 // pred_region
    _
  $region21: #{feed_forward.1} parent=0 // pred_fallthru
    _
  %p21 = scmp.eq.s32.totalorder 0, 0
  // Predicated region
  $region22: #{feed_forward.1} parent=0 // pred_check
    %p22 = pneg %p21
  $region23: #{feed_forward.1} parent=0 // pred_check_branch
    %24 = sbr.rel (%p22) target = $region25
  $region24: #{feed_forward.1} parent=0 // pred_region
    %25 = vst [vmem:[#allocation2] sm:$0xff] 0.0
    %26 = vst [vmem:[#allocation2 + $0x8] sm:$0xff] 0.0
  $region25: #{feed_forward.1} parent=0 // pred_fallthru
    _
  %v27 = vld [vmem:[%s0] sm:$0xff]
  %v28 = vld [vmem:[%s0 + $0x8] sm:$0xff]
  %v29 = vpack.c.bf16 %v28, %v27
  %v30 = vld [vmem:[%s1] sm:$0xf]
  %v31 = vld [vmem:[%s1 + $0x4] sm:$0xf]
  %v32 = vld [vmem:[%s1 + $0x8] sm:$0xf]
  %v33 = vld [vmem:[%s1 + $0xc] sm:$0xf]
  %v34 = vld [vmem:[%s1 + $0x10] sm:$0xf]
  %v35 = vld [vmem:[%s1 + $0x14] sm:$0xf]
  %v36 = vld [vmem:[%s1 + $0x18] sm:$0xf]
  %v37 = vld [vmem:[%s1 + $0x1c] sm:$0xf]
  %v38 = vld [vmem:[%s1 + $0x20] sm:$0xf]
  %v39 = vld [vmem:[%s1 + $0x24] sm:$0xf]
  %v40 = vld [vmem:[%s1 + $0x28] sm:$0xf]
  %v41 = vld [vmem:[%s1 + $0x2c] sm:$0xf]
  %v42 = vld [vmem:[%s1 + $0x30] sm:$0xf]
  %v43 = vld [vmem:[%s1 + $0x34] sm:$0xf]
  %v44 = vld [vmem:[%s1 + $0x38] sm:$0xf]
  %v45 = vld [vmem:[%s1 + $0x3c] sm:$0xf]
  %v46 = vld [vmem:[%s2] sm:$0x1]
  %v48 = vlaneseq
  %v49 = vshrl.u32 %v48, 7
  %v50 = vsub.s32 0, %v49
  %v51 = vrot.slane %v46, %v50
  %v69 = vunpack.c.l.b16 %v30
  %v70 = vunpack.c.l.b16 %v31
  %v71 = vunpack.c.l.b16 %v32
  %v72 = vunpack.c.l.b16 %v33
  %v73 = vunpack.c.l.b16 %v34
  %v74 = vunpack.c.l.b16 %v35
  %v75 = vunpack.c.l.b16 %v36
  %v76 = vunpack.c.l.b16 %v37
  %v77 = vunpack.c.l.b16 %v38
  %v78 = vunpack.c.l.b16 %v39
  %v79 = vunpack.c.l.b16 %v40
  %v80 = vunpack.c.l.b16 %v41
  %v81 = vunpack.c.l.b16 %v42
  %v82 = vunpack.c.l.b16 %v43
  %v83 = vunpack.c.l.b16 %v44
  %v84 = vunpack.c.l.b16 %v45
  %v85 = vpack.c.b16 %v70, %v69
  %v86 = vpack.c.b16 %v72, %v71
  %v87 = vpack.c.b16 %v74, %v73
  %v88 = vpack.c.b16 %v76, %v75
  %v89 = vpack.c.b16 %v78, %v77
  %v90 = vpack.c.b16 %v80, %v79
  %v91 = vpack.c.b16 %v82, %v81
  %v92 = vpack.c.b16 %v84, %v83
  %101 = vmatprep.subr.bf16.mxu0 0
  %102 = vmatpush1.bf16.msra.mxu0 %v92
  %103 = vmatprep.subr.bf16.mxu0 0
  %104 = vmatpush1.bf16.msra.mxu0 %v91
  %105 = vmatprep.subr.bf16.mxu0 0
  %106 = vmatpush1.bf16.msra.mxu0 %v90
  %107 = vmatprep.subr.bf16.mxu0 0
  %108 = vmatpush1.bf16.msra.mxu0 %v89
  %109 = vmatprep.subr.bf16.mxu0 0
  %110 = vmatpush1.bf16.msra.mxu0 %v88
  %111 = vmatprep.subr.bf16.mxu0 0
  %112 = vmatpush1.bf16.msra.mxu0 %v87
  %113 = vmatprep.subr.bf16.mxu0 0
  %114 = vmatpush1.bf16.msra.mxu0 %v86
  %115 = vmatprep.subr.bf16.mxu0 0
  %116 = vmatpush1.bf16.msra.mxu0 %v85
  %117 = vmatprep.subr.bf16.mxu0 0
  %118 = vmatpush2.bf16.msra.mxu0 0
  %119 = vmatprep.subr.bf16.mxu0 0
  %120 = vmatpush2.bf16.msra.mxu0 0
  %121 = vmatprep.subr.bf16.mxu0 0
  %122 = vmatpush2.bf16.msra.mxu0 0
  %123 = vmatprep.subr.bf16.mxu0 0
  %124 = vmatpush2.bf16.msra.mxu0 0
  %125 = vmatprep.subr.bf16.mxu0 0
  %126 = vmatpush2.bf16.msra.mxu0 0
  %127 = vmatprep.subr.bf16.mxu0 0
  %128 = vmatpush2.bf16.msra.mxu0 0
  %129 = vmatprep.subr.bf16.mxu0 0
  %130 = vmatpush2.bf16.msra.mxu0 0
  %131 = vmatprep.subr.bf16.mxu0 0
  %132 = vmatpush2.bf16.msra.mxu0 0
  %133 = vmatprep.mubr.bf16.mxu0 0
  %134 = vmatmul.mubr.bf16.gmra.mxu0 %v29
  %v135 = vpop.f32.mrf.mxu0
  %v136 = vadd.f32 %v51, %v135
  %v137 = vpop.f32.mrf.mxu0
  %v138 = vpop.f32.mrf.mxu0
  %v139 = vadd.f32 %v51, %v138
  %v140 = vpop.f32.mrf.mxu0
  %141 = vdwg.mxu0
  %v142 = vmul.f32 %v136, 0.5
  %v143 = vmul.f32 %v139, 0.5
  %v144 = vmul.f32 %v136, 0.044715
  %v145 = vmul.f32 %v139, 0.044715
  %v146 = vmul.f32 %v144, %v136
  %v147 = vmul.f32 %v145, %v139
  %v148 = vmul.f32 %v146, %v136
  %v149 = vmul.f32 %v147, %v139
  %v150 = vadd.f32 %v136, %v148
  %v151 = vadd.f32 %v139, %v149
  %v152 = vmul.f32 %v150, 0.7978846
  %v153 = vmul.f32 %v151, 0.7978846
  %v154 = vtanh.pop %v152
  %v155 = vtanh.pop %v153
  %v156 = vadd.f32 %v154, 1.0
  %v157 = vadd.f32 %v155, 1.0
  %v158 = vmul.f32 %v142, %v156
  %v159 = vmul.f32 %v143, %v157
  %v160 = vld [vmem:[#allocation2] sm:$0xff]
  %v161 = vld [vmem:[#allocation2 + $0x8] sm:$0xff]
  %v162 = vpack.c.bf16 %v159, %v158
  %v163 = vld [vmem:[%s3] sm:$0xf]
  %v164 = vld [vmem:[%s3 + $0x4] sm:$0xf]
  %v165 = vld [vmem:[%s3 + $0x8] sm:$0xf]
  %v166 = vld [vmem:[%s3 + $0xc] sm:$0xf]
  %v167 = vld [vmem:[%s3 + $0x10] sm:$0xf]
  %v168 = vld [vmem:[%s3 + $0x14] sm:$0xf]
  %v169 = vld [vmem:[%s3 + $0x18] sm:$0xf]
  %v170 = vld [vmem:[%s3 + $0x1c] sm:$0xf]
  %v171 = vld [vmem:[%s3 + $0x20] sm:$0xf]
  %v172 = vld [vmem:[%s3 + $0x24] sm:$0xf]
  %v173 = vld [vmem:[%s3 + $0x28] sm:$0xf]
  %v174 = vld [vmem:[%s3 + $0x2c] sm:$0xf]
  %v175 = vld [vmem:[%s3 + $0x30] sm:$0xf]
  %v176 = vld [vmem:[%s3 + $0x34] sm:$0xf]
  %v177 = vld [vmem:[%s3 + $0x38] sm:$0xf]
  %v178 = vld [vmem:[%s3 + $0x3c] sm:$0xf]
  %v195 = vunpack.c.l.b16 %v163
  %v196 = vunpack.c.l.b16 %v164
  %v197 = vunpack.c.l.b16 %v165
  %v198 = vunpack.c.l.b16 %v166
  %v199 = vunpack.c.l.b16 %v167
  %v200 = vunpack.c.l.b16 %v168
  %v201 = vunpack.c.l.b16 %v169
  %v202 = vunpack.c.l.b16 %v170
  %v203 = vunpack.c.l.b16 %v171
  %v204 = vunpack.c.l.b16 %v172
  %v205 = vunpack.c.l.b16 %v173
  %v206 = vunpack.c.l.b16 %v174
  %v207 = vunpack.c.l.b16 %v175
  %v208 = vunpack.c.l.b16 %v176
  %v209 = vunpack.c.l.b16 %v177
  %v210 = vunpack.c.l.b16 %v178
  %v211 = vpack.c.b16 %v196, %v195
  %v212 = vpack.c.b16 %v198, %v197
  %v213 = vpack.c.b16 %v200, %v199
  %v214 = vpack.c.b16 %v202, %v201
  %v215 = vpack.c.b16 %v204, %v203
  %v216 = vpack.c.b16 %v206, %v205
  %v217 = vpack.c.b16 %v208, %v207
  %v218 = vpack.c.b16 %v210, %v209
  %227 = vmatprep.subr.bf16.mxu0 0
  %228 = vmatpush1.bf16.msra.mxu0 %v218
  %229 = vmatprep.subr.bf16.mxu0 0
  %230 = vmatpush1.bf16.msra.mxu0 %v217
  %231 = vmatprep.subr.bf16.mxu0 0
  %232 = vmatpush1.bf16.msra.mxu0 %v216
  %233 = vmatprep.subr.bf16.mxu0 0
  %234 = vmatpush1.bf16.msra.mxu0 %v215
  %235 = vmatprep.subr.bf16.mxu0 0
  %236 = vmatpush1.bf16.msra.mxu0 %v214
  %237 = vmatprep.subr.bf16.mxu0 0
  %238 = vmatpush1.bf16.msra.mxu0 %v213
  %239 = vmatprep.subr.bf16.mxu0 0
  %240 = vmatpush1.bf16.msra.mxu0 %v212
  %241 = vmatprep.subr.bf16.mxu0 0
  %242 = vmatpush1.bf16.msra.mxu0 %v211
  %243 = vmatprep.subr.bf16.mxu0 0
  %244 = vmatpush2.bf16.msra.mxu0 0
  %245 = vmatprep.subr.bf16.mxu0 0
  %246 = vmatpush2.bf16.msra.mxu0 0
  %247 = vmatprep.subr.bf16.mxu0 0
  %248 = vmatpush2.bf16.msra.mxu0 0
  %249 = vmatprep.subr.bf16.mxu0 0
  %250 = vmatpush2.bf16.msra.mxu0 0
  %251 = vmatprep.subr.bf16.mxu0 0
  %252 = vmatpush2.bf16.msra.mxu0 0
  %253 = vmatprep.subr.bf16.mxu0 0
  %254 = vmatpush2.bf16.msra.mxu0 0
  %255 = vmatprep.subr.bf16.mxu0 0
  %256 = vmatpush2.bf16.msra.mxu0 0
  %257 = vmatprep.subr.bf16.mxu0 0
  %258 = vmatpush2.bf16.msra.mxu0 0
  %259 = vmatprep.mubr.bf16.mxu0 0
  %260 = vmatmul.mubr.bf16.gmra.mxu0 %v162
  %v261 = vpop.f32.mrf.mxu0
  %v262 = vadd.f32 0.0, %v261
  %v263 = vpop.f32.mrf.mxu0
  %v264 = vpop.f32.mrf.mxu0
  %v265 = vadd.f32 0.0, %v264
  %v266 = vpop.f32.mrf.mxu0
  %267 = vdwg.mxu0
  %v268 = vadd.f32 %v160, %v262
  %v269 = vadd.f32 %v161, %v265
  %270 = vst [vmem:[#allocation2] sm:$0xff] %v268
  %271 = vst [vmem:[#allocation2 + $0x8] sm:$0xff] %v269
  // Predicated region
  $region26: #{feed_forward.1} parent=0 // pred_check
    %p272 = pneg %p21
  $region27: #{feed_forward.1} parent=0 // pred_check_branch
    %274 = sbr.rel (%p272) target = $region29
  $region28: #{feed_forward.1} parent=0 // pred_region
    %v275 = vld [vmem:[#allocation2] sm:$0xff]
    %v276 = vld [vmem:[#allocation2 + $0x8] sm:$0xff]
    %v277 = vld [vmem:[%s4] sm:$0x1]
    %v279 = vlaneseq
    %v280 = vshrl.u32 %v279, 7
    %v281 = vsub.s32 0, %v280
    %v282 = vrot.slane %v277, %v281
    %v284 = vadd.f32 %v275, %v282
    %v285 = vadd.f32 %v276, %v282
    %286 = vst [vmem:[%s5] sm:$0xff] %v284
    %287 = vst [vmem:[%s5 + $0x8] sm:$0xff] %v285
  $region29: #{feed_forward.1} parent=0 // pred_fallthru
    _
  // Predicated region
  $region30: #{feed_forward.1} parent=0 // pred_check
    _
  $region31: #{feed_forward.1} parent=0 // pred_check_branch
    %289 = sbr.rel (0) target = $region33
  $region32: #{feed_forward.1} parent=0 // pred_region
    _
  $region33: #{feed_forward.1} parent=0 // pred_fallthru
    _
  // Predicated region
  $region34: #{feed_forward.1} parent=0 // pred_check
    _
  $region35: #{feed_forward.1} parent=0 // pred_check_branch
    %291 = sbr.rel (0) target = $region37
  $region36: #{feed_forward.1} parent=0 // pred_region
    _
  $region37: #{feed_forward.1} parent=0 // pred_fallthru
    _

</llo_original>
